<compile_context>
chip_gen: v7x
topology: tpu7x:2x2x1
jax: 0.10.0
libtpu: 0.0.40
codegen_flags: <defaults>
</compile_context>

<pallas_src>
import functools

import jax
import jax.numpy as jnp
from jax import lax
from jax.experimental import pallas as pl
from jax.experimental.pallas import tpu as pltpu


_NEG_BIG = -1e30  # finite sentinel: fully-masked rows give uniform softmax, not NaN


def _round_up(x, m):
    return ((x + m - 1) // m) * m


def _default_vmem_limit_bytes():
    """~3/4 of physical VMEM, capped at 100 MiB (v5e/v6e ~96 MiB, v7x 48 MiB)."""
    cap = None
    try:
        cap = getattr(pltpu.get_tpu_info(), "vmem_capacity_bytes", None)
    except Exception:
        cap = None
    if not cap:
        return 48 * 1024 * 1024  # conservative fallback (fits v7x's 64 MiB)
    return min(int(cap) * 3 // 4, 100 * 1024 * 1024)


def _head_kernel(*refs, fused_kv, has_mask, causal, kv_valid, compute_dtype,
                 bf16_exp, approx_recip, n_kv, kv_chunk):
    it = iter(refs)
    q_ref = next(it)
    if fused_kv:
        kv_ref = next(it)
        k_ref = v_ref = kv_ref
    else:
        k_ref = next(it)
        v_ref = next(it)
    wq_ref, bq_ref, wkv_ref, bkv_ref = next(it), next(it), next(it), next(it)
    mask_ref = next(it) if has_mask else None
    out_ref = next(it)
    kt_s = next(it)          # (n_kv, Hp, kv_chunk)   projected K, transposed
    vp_s = next(it)          # (n_kv, kv_chunk, Hp)   projected V

    Hp = kt_s.shape[1]
    tq = q_ref.shape[1]

    # ---- K/V projections: computed once per batch element (first q tile) and
    #      persisted in VMEM scratch across the sequential q-tile axis.  K is
    #      transposed here, once per batch, so every q tile does a plain
    #      (tq,Hp)@(Hp,ck) matmul (no per-tile transpose / kp copy). ----------
    @pl.when(pl.program_id(1) == 0)
    def _():
        if fused_kv:
            # single input stream, single fused (C, 2*Hp) projection matmul
            x = k_ref[0].astype(compute_dtype)                       # (Tk, C)
            kvp = jnp.dot(x, wkv_ref[...],
                          preferred_element_type=jnp.float32) + bkv_ref[...]
            kp, vp = kvp[:, :Hp], kvp[:, Hp:]
        else:
            kp = jnp.dot(k_ref[0].astype(compute_dtype), wkv_ref[:, :Hp],
                         preferred_element_type=jnp.float32) + bkv_ref[:, :Hp]
            vp = jnp.dot(v_ref[0].astype(compute_dtype), wkv_ref[:, Hp:],
                         preferred_element_type=jnp.float32) + bkv_ref[:, Hp:]
        for j in range(n_kv):                                        # static
            rows = slice(j * kv_chunk, (j + 1) * kv_chunk)
            kt_s[j] = kp[rows, :].T.astype(compute_dtype)            # (Hp, ck)
            vp_s[j] = vp[rows, :].astype(compute_dtype)              # (ck, Hp)

    # ---- Q projection for this tile (1/sqrt(C) already folded into Wq/bq). --
    qp = (jnp.dot(q_ref[0].astype(compute_dtype), wq_ref[...],
                  preferred_element_type=jnp.float32)
          + bq_ref[...]).astype(compute_dtype)                       # (tq, Hp)

    row0 = pl.program_id(1) * tq

    def scores(j, kt_chunk):
        s = jnp.dot(qp, kt_chunk, preferred_element_type=jnp.float32)  # (tq,ck)
        ck = kt_chunk.shape[1]
        if has_mask:
            # dynamic mask streamed as int8 (single-pass path only)
            s = jnp.where(mask_ref[0] == 0, _NEG_BIG, s)
        elif causal:
            # causal mask generated in-kernel: no (B,T,T) HBM stream
            r = row0 + lax.broadcasted_iota(jnp.int32, (tq, ck), 0)
            c = j * kv_chunk + lax.broadcasted_iota(jnp.int32, (tq, ck), 1)
            s = jnp.where(c > r, _NEG_BIG, s)
        elif kv_valid is not None:
            # padded key columns (T not a multiple of 8 / kv chunk)
            c = j * kv_chunk + lax.broadcasted_iota(jnp.int32, (tq, ck), 1)
            s = jnp.where(c >= kv_valid, _NEG_BIG, s)
        return s

    def _exp(x):
        # bf16 exp roughly doubles EUP throughput on v6e/v7x; f32 otherwise.
        return jnp.exp(x.astype(jnp.bfloat16)) if bf16_exp else jnp.exp(x)

    if n_kv == 1:
        # single pass: full (tq, Tk) score tile
        s = scores(0, kt_s[0])
        m = jnp.max(s, axis=-1, keepdims=True)
        e = _exp(s - m)
        l = jnp.sum(e.astype(jnp.float32), axis=-1, keepdims=True)
        acc = jnp.dot(e.astype(compute_dtype), vp_s[0],
                      preferred_element_type=jnp.float32)
    else:
        # flash-style online softmax over KV chunks: VMEM / live tiles are
        # independent of T.
        def body(j, carry):
            m_p, l_p, acc_p = carry
            s = scores(j, kt_s[j])
            m_n = jnp.maximum(m_p, jnp.max(s, axis=-1, keepdims=True))
            corr = jnp.exp(m_p - m_n)
            e = _exp(s - m_n)
            l_n = corr * l_p + jnp.sum(e.astype(jnp.float32),
                                       axis=-1, keepdims=True)
            acc_n = corr * acc_p + jnp.dot(e.astype(compute_dtype), vp_s[j],
                                           preferred_element_type=jnp.float32)
            return m_n, l_n, acc_n

        init = (jnp.full((tq, 1), _NEG_BIG, jnp.float32),
                jnp.zeros((tq, 1), jnp.float32),
                jnp.zeros((tq, Hp), jnp.float32))
        _, l, acc = lax.fori_loop(0, n_kv, body, init)

    inv = pl.reciprocal(l, approx=approx_recip)   # EUP slot
    # dropout: module evaluated in eval/inference mode -> identity.
    out_ref[0] = (acc * inv).astype(out_ref.dtype)


def head_forward(k, v, q, params, mask=None, *,
                 causal=False,
                 compute_dtype=jnp.float32,
                 tile_q=256,
                 kv_block=512,
                 kv_buffers=None,
                 bf16_exp=False,
                 approx_recip=True,
                 keep_padded=False,
                 vmem_limit_bytes=None):
    """Pallas single-head attention (eval semantics of the PyTorch `Head`).

    k, v, q : (B, T, C).  If `k is v` (self-attention), a single fused KV
              stream + one fused (C, 2*Hp) projection matmul is used.
    mask    : optional (B, T, T)-broadcastable; entries == 0 are masked out
              (streamed as int8).  Use `causal=True` instead for causal
              attention: the mask is then generated in-kernel (no HBM stream).
    params  : dict with Wk, bk, Wv, bv, Wq, bq  (W: (C, H) == W_pt.T, b: (H,)).
    compute_dtype : MXU operand dtype.  bfloat16 is recommended on ALL
              generations (v5e/v6e/v7x): full-rate MXU, half the K/V/Q VMEM
              and scratch; accumulation and softmax stay f32.
    tile_q  : query tile (256 matches the 256-wide MXU on v6e/v7x; 128 is
              already matched on v5e).
    kv_block: KV chunk for the flash-style online-softmax loop (used when
              T > kv_block and no dynamic mask is streamed).
    kv_buffers : set to 1 on v7x to single-buffer the K/V and weight blocks
              (halves their VMEM residency; they are constant across the
              inner q-tile axis so only batch-boundary overlap is lost).
    bf16_exp: do the softmax exp in bf16 (v6e/v7x EUP fast path).
    keep_padded : return the (B, Tq_pad, 128) padded output (lets a fused
              downstream consumer skip the extra slice pass when H << 128).
    returns : (B, T, H), same dtype as q (unless keep_padded).
    """
    B, T, C = q.shape
    H = params["Wq"].shape[1]
    out_dtype = q.dtype
    scale = float(C) ** (-0.5)

    if causal and mask is not None:
        raise ValueError("pass either causal=True or an explicit mask, not both")
    assert tile_q % 8 == 0 and kv_block % 8 == 0

    # Lane-dense head dim: pad H up to a multiple of 128 (sliced off at the end).
    Hp = max(128, _round_up(H, 128))

    def pad_w(w):
        return w if Hp == H else jnp.pad(w, ((0, 0), (0, Hp - H)))

    def pad_b(b):
        b = b if Hp == H else jnp.pad(b, (0, Hp - H))
        return b.reshape(1, Hp).astype(jnp.float32)

    # Fold the softmax scale into the Q projection; fuse Wk|Wv and bk|bv.
    wq = (pad_w(params["Wq"]) * scale).astype(compute_dtype)
    bq = pad_b(params["bq"]) * scale
    wkv = jnp.concatenate([pad_w(params["Wk"]), pad_w(params["Wv"])],
                          axis=1).astype(compute_dtype)              # (C, 2Hp)
    bkv = jnp.concatenate([pad_b(params["bk"]), pad_b(params["bv"])], axis=1)

    fused_kv = k is v
    has_mask = mask is not None

    # Query tiling: pad the query axis instead of a silent tq=T fallback.
    tq = tile_q if T >= tile_q else _round_up(T, 8)
    Tq_pad = _round_up(T, tq)
    nq = Tq_pad // tq

    # Key/value axis: flash-style chunking for long sequences (no dynamic mask).
    use_flash = (not has_mask) and (T > kv_block)
    if use_flash:
        kv_chunk = kv_block
        Tk_pad = _round_up(T, kv_chunk)
    else:
        Tk_pad = _round_up(T, 8)
        kv_chunk = Tk_pad
    n_kv = Tk_pad // kv_chunk
    kv_valid = T if (Tk_pad != T and not causal and not has_mask) else None

    # Inputs stay in their NATIVE dtype (cast inside the kernel); padding only
    # when the shapes are not already aligned.
    def pad_seq(x, L):
        return x if x.shape[1] == L else jnp.pad(
            x, ((0, 0), (0, L - x.shape[1]), (0, 0)))

    q_in = pad_seq(q, Tq_pad)

    per_q = lambda b, i: (b, i, 0)
    per_b = lambda b, i: (b, 0, 0)     # same block across q tiles -> fetched once per b
    whole = lambda b, i: (0, 0)

    def const_spec(shape, index_map):
        # K/V and weight blocks: constant along the inner axis; optionally
        # single-buffered (kv_buffers=1) to halve VMEM residency on v7x.
        if kv_buffers is None:
            return pl.BlockSpec(shape, index_map)
        return pl.BlockSpec(shape, index_map, pipeline_mode=pl.Buffered(kv_buffers))

    in_specs = [pl.BlockSpec((1, tq, C), per_q)]
    args = [q_in]
    if fused_kv:
        in_specs.append(const_spec((1, Tk_pad, C), per_b))
        args.append(pad_seq(k, Tk_pad))
    else:
        in_specs += [const_spec((1, Tk_pad, C), per_b),
                     const_spec((1, Tk_pad, C), per_b)]
        args += [pad_seq(k, Tk_pad), pad_seq(v, Tk_pad)]
    in_specs += [const_spec((C, Hp), whole), const_spec((1, Hp), whole),
                 const_spec((C, 2 * Hp), whole), const_spec((1, 2 * Hp), whole)]
    args += [wq, bq, wkv, bkv]

    if has_mask:
        # PyTorch: masked_fill(mask[:, :T] == 0, -inf).  Streamed as int8.
        m = jnp.broadcast_to(mask[:, :T], (B, T, T))
        m_i8 = (m != 0).astype(jnp.int8)
        if Tq_pad != T or Tk_pad != T:
            m_i8 = jnp.pad(m_i8, ((0, 0), (0, Tq_pad - T), (0, Tk_pad - T)))
        in_specs.append(pl.BlockSpec((1, tq, Tk_pad), per_q))
        args.append(m_i8)

    if vmem_limit_bytes is None:
        vmem_limit_bytes = _default_vmem_limit_bytes()

    kernel = functools.partial(
        _head_kernel, fused_kv=fused_kv, has_mask=has_mask, causal=causal,
        kv_valid=kv_valid, compute_dtype=compute_dtype, bf16_exp=bf16_exp,
        approx_recip=approx_recip, n_kv=n_kv, kv_chunk=kv_chunk)

    out = pl.pallas_call(
        kernel,
        out_shape=jax.ShapeDtypeStruct((B, Tq_pad, Hp), out_dtype),
        grid_spec=pltpu.PrefetchScalarGridSpec(
            num_scalar_prefetch=0,
            grid=(B, nq),
            in_specs=in_specs,
            out_specs=pl.BlockSpec((1, tq, Hp), per_q),
            scratch_shapes=[pltpu.VMEM((n_kv, Hp, kv_chunk), compute_dtype),
                            pltpu.VMEM((n_kv, kv_chunk, Hp), compute_dtype)],
        ),
        compiler_params=pltpu.CompilerParams(
            # batch axis parallel (megacore); q-tile axis sequential so the
            # per-batch K/V projection scratch is reused across q tiles.
            dimension_semantics=("parallel", "arbitrary"),
            vmem_limit_bytes=vmem_limit_bytes,
        ),
    )(*args)

    if keep_padded:
        return out
    return out[:, :T, :H]


def _reference(k, v, q, params, mask=None):
    """Pure-JAX reference mirroring the PyTorch forward (eval mode)."""
    B, T, C = q.shape
    kp = k @ params["Wk"] + params["bk"]
    qp = q @ params["Wq"] + params["bq"]
    vp = v @ params["Wv"] + params["bv"]
    attn = jnp.einsum("bth,bsh->bts", qp, kp) * (C ** -0.5)
    if mask is not None:
        attn = jnp.where(mask == 0, -jnp.inf, attn)
    attn = jax.nn.softmax(attn, axis=-1)
    return jnp.einsum("bts,bsh->bth", attn, vp)


if __name__ == "__main__":
    B, T, C, H = 2, 8, 32, 16   # batch, seq, embedding_size, head_size

    key = jax.random.PRNGKey(0)
    ks = jax.random.split(key, 12)
    k_in = jax.random.normal(ks[0], (B, T, C), jnp.float32)
    v_in = jax.random.normal(ks[1], (B, T, C), jnp.float32)
    q_in = jax.random.normal(ks[2], (B, T, C), jnp.float32)

    lim = 1.0 / (C ** 0.5)
    params = {
        "Wk": jax.random.uniform(ks[3], (C, H), jnp.float32, -lim, lim),
        "Wv": jax.random.uniform(ks[4], (C, H), jnp.float32, -lim, lim),
        "Wq": jax.random.uniform(ks[5], (C, H), jnp.float32, -lim, lim),
        "bk": jax.random.uniform(ks[6], (H,), jnp.float32, -lim, lim),
        "bv": jax.random.uniform(ks[7], (H,), jnp.float32, -lim, lim),
        "bq": jax.random.uniform(ks[8], (H,), jnp.float32, -lim, lim),
    }

    # 1) no mask, f32, distinct k/v/q (separate K and V projections).
    out = jax.block_until_ready(head_forward(k_in, v_in, q_in, params))
    ref = _reference(k_in, v_in, q_in, params)
    assert out.shape == (B, T, H)
    assert jnp.allclose(out, ref, atol=1e-2, rtol=1e-2), "no-mask f32 mismatch"

    # 2) dynamic mask -> streamed int8 path.
    m_rand = (jax.random.uniform(ks[9], (B, T, T)) > 0.4).astype(jnp.int32)
    m_rand = jnp.maximum(m_rand, jnp.eye(T, dtype=jnp.int32)[None])
    out_m = jax.block_until_ready(
        head_forward(k_in, v_in, q_in, params, mask=m_rand))
    ref_m = _reference(k_in, v_in, q_in, params, mask=m_rand)
    assert jnp.allclose(out_m, ref_m, atol=1e-2, rtol=1e-2), "dynamic-mask mismatch"

    # 3) self-attention (k is v is q): fused K|V projection + single KV stream,
    #    in-kernel causal mask, bf16 matmul operands + bf16 softmax exp.
    x = q_in
    tril = jnp.broadcast_to(jnp.tril(jnp.ones((T, T), jnp.int32)), (B, T, T))
    out_c = jax.block_until_ready(
        head_forward(x, x, x, params, causal=True,
                     compute_dtype=jnp.bfloat16, bf16_exp=True))
    ref_c = _reference(x, x, x, params, mask=tril)
    assert jnp.allclose(out_c, ref_c, atol=5e-2, rtol=5e-2), "fused/causal bf16 mismatch"

    # 4) longer sequence: multiple q tiles + flash-style chunked KV loop.
    T2 = 256
    x2 = jax.random.normal(ks[10], (B, T2, C), jnp.float32)
    out_f = jax.block_until_ready(
        head_forward(x2, x2, x2, params, causal=True, tile_q=128, kv_block=128))
    tril2 = jnp.broadcast_to(jnp.tril(jnp.ones((T2, T2), jnp.int32)), (B, T2, T2))
    ref_f = _reference(x2, x2, x2, params, mask=tril2)
    assert out_f.shape == (B, T2, H)
    assert jnp.allclose(out_f, ref_f, atol=1e-2, rtol=1e-2), "flash path mismatch"

    # 5) non-aligned T: query/key padding path (no silent tq=T fallback).
    T3 = 100
    k3 = jax.random.normal(ks[11], (1, T3, C), jnp.float32)
    v3 = jax.random.normal(ks[0], (1, T3, C), jnp.float32)
    q3 = jax.random.normal(ks[1], (1, T3, C), jnp.float32)
    out_p = jax.block_until_ready(head_forward(k3, v3, q3, params, tile_q=64))
    ref_p = _reference(k3, v3, q3, params)
    assert out_p.shape == (1, T3, H)
    assert jnp.allclose(out_p, ref_p, atol=1e-2, rtol=1e-2), "padded-T mismatch"

    print("KERNEL_OK")
</pallas_src>

<mosaic_0001>
module attributes {stable_mosaic.version = 11 : i64} {
  func.func @_head_kernel(%arg0: i32, %arg1: i32, %arg2: memref<1x8x32xf32, #tpu.memory_space<vmem>>, %arg3: memref<1x8x32xf32, #tpu.memory_space<vmem>>, %arg4: memref<1x8x32xf32, #tpu.memory_space<vmem>>, %arg5: memref<32x128xf32, #tpu.memory_space<vmem>>, %arg6: memref<1x128xf32, #tpu.memory_space<vmem>>, %arg7: memref<32x256xf32, #tpu.memory_space<vmem>>, %arg8: memref<1x256xf32, #tpu.memory_space<vmem>>, %arg9: memref<1x8x128xf32, #tpu.memory_space<vmem>>, %arg10: memref<1x128x8xf32, #tpu.memory_space<vmem>>, %arg11: memref<1x8x128xf32, #tpu.memory_space<vmem>>) attributes {dimension_semantics = [#tpu.dimension_semantics<parallel>, #tpu.dimension_semantics<arbitrary>], iteration_bounds = array<i64: 2, 1>, scalar_prefetch = 0 : i64, scratch_operands = 2 : i64, tpu.core_type = #tpu.core_type<tc>, window_params = [{transform_indices = @transform_0, window_bounds = array<i64: 1, 8, 32>}, {transform_indices = @transform_1, window_bounds = array<i64: 1, 8, 32>}, {transform_indices = @transform_2, window_bounds = array<i64: 1, 8, 32>}, {pipeline_mode = #tpu.pipeline_mode<synchronous>, transform_indices = @transform_3, window_bounds = array<i64: 32, 128>}, {pipeline_mode = #tpu.pipeline_mode<synchronous>, transform_indices = @transform_4, window_bounds = array<i64: 1, 128>}, {pipeline_mode = #tpu.pipeline_mode<synchronous>, transform_indices = @transform_5, window_bounds = array<i64: 32, 256>}, {pipeline_mode = #tpu.pipeline_mode<synchronous>, transform_indices = @transform_6, window_bounds = array<i64: 1, 256>}, {transform_indices = @transform_7, window_bounds = array<i64: 1, 8, 128>}]} {
    %c0_i32 = arith.constant 0 : i32
    %0 = arith.cmpi eq, %arg1, %c0_i32 : i32
    %1 = arith.extui %0 : i1 to i32
    %c0_i32_0 = arith.constant 0 : i32
    %2 = arith.cmpi ne, %1, %c0_i32_0 : i32
    scf.if %2 {
      %c0_20 = arith.constant 0 : index
      %c0_21 = arith.constant 0 : index
      %c0_22 = arith.constant 0 : index
      %29 = vector.load %arg3[%c0_20, %c0_21, %c0_22] : memref<1x8x32xf32, #tpu.memory_space<vmem>>, vector<1x8x32xf32>
      %30 = vector.shape_cast %29 : vector<1x8x32xf32> to vector<8x32xf32>
      %c0_23 = arith.constant 0 : index
      %c0_24 = arith.constant 0 : index
      %31 = vector.load %arg7[%c0_23, %c0_24] : memref<32x256xf32, #tpu.memory_space<vmem>>, vector<32x128xf32>
      %cst_25 = arith.constant dense<0.000000e+00> : vector<8x128xf32>
      %32 = tpu.matmul %30, %31, %cst_25 {dimension_numbers = #tpu.dot_dimension_numbers<[1], [0], [0], [1], [0, 0, 1, 1], [], []>} : vector<8x32xf32>, vector<32x128xf32>, vector<8x128xf32> -> vector<8x128xf32>
      %c0_26 = arith.constant 0 : index
      %c0_27 = arith.constant 0 : index
      %33 = vector.load %arg8[%c0_26, %c0_27] : memref<1x256xf32, #tpu.memory_space<vmem>>, vector<1x128xf32>
      %34 = vector.broadcast %33 : vector<1x128xf32> to vector<8x128xf32>
      %35 = arith.addf %32, %34 : vector<8x128xf32>
      %c0_28 = arith.constant 0 : index
      %c0_29 = arith.constant 0 : index
      %c0_30 = arith.constant 0 : index
      %36 = vector.load %arg4[%c0_28, %c0_29, %c0_30] : memref<1x8x32xf32, #tpu.memory_space<vmem>>, vector<1x8x32xf32>
      %37 = vector.shape_cast %36 : vector<1x8x32xf32> to vector<8x32xf32>
      %c0_31 = arith.constant 0 : index
      %c128 = arith.constant 128 : index
      %38 = vector.load %arg7[%c0_31, %c128] : memref<32x256xf32, #tpu.memory_space<vmem>>, vector<32x128xf32>
      %cst_32 = arith.constant dense<0.000000e+00> : vector<8x128xf32>
      %39 = tpu.matmul %37, %38, %cst_32 {dimension_numbers = #tpu.dot_dimension_numbers<[1], [0], [0], [1], [0, 0, 1, 1], [], []>} : vector<8x32xf32>, vector<32x128xf32>, vector<8x128xf32> -> vector<8x128xf32>
      %c0_33 = arith.constant 0 : index
      %c128_34 = arith.constant 128 : index
      %40 = vector.load %arg8[%c0_33, %c128_34] : memref<1x256xf32, #tpu.memory_space<vmem>>, vector<1x128xf32>
      %41 = vector.broadcast %40 : vector<1x128xf32> to vector<8x128xf32>
      %42 = arith.addf %39, %41 : vector<8x128xf32>
      %43 = tpu.transpose %35, [1, 0] : vector<8x128xf32> -> vector<128x8xf32>
      %c0_35 = arith.constant 0 : index
      %c0_36 = arith.constant 0 : index
      %c0_37 = arith.constant 0 : index
      %44 = vector.load %arg10[%c0_35, %c0_36, %c0_37] : memref<1x128x8xf32, #tpu.memory_space<vmem>>, vector<1x128x8xf32>
      %45 = vector.shape_cast %44 : vector<1x128x8xf32> to vector<128x8xf32>
      %46 = vector.shape_cast %43 : vector<128x8xf32> to vector<1x128x8xf32>
      tpu.vector_store %arg10[%c0_35, %c0_36, %c0_37], %46 {strides = array<i32>} : memref<1x128x8xf32, #tpu.memory_space<vmem>>, vector<1x128x8xf32>,
      %c0_38 = arith.constant 0 : index
      %c0_39 = arith.constant 0 : index
      %c0_40 = arith.constant 0 : index
      %47 = vector.load %arg11[%c0_38, %c0_39, %c0_40] : memref<1x8x128xf32, #tpu.memory_space<vmem>>, vector<1x8x128xf32>
      %48 = vector.shape_cast %47 : vector<1x8x128xf32> to vector<8x128xf32>
      %49 = vector.shape_cast %42 : vector<8x128xf32> to vector<1x8x128xf32>
      tpu.vector_store %arg11[%c0_38, %c0_39, %c0_40], %49 {strides = array<i32>} : memref<1x8x128xf32, #tpu.memory_space<vmem>>, vector<1x8x128xf32>,
    } else {
    }
    %c0 = arith.constant 0 : index
    %c0_1 = arith.constant 0 : index
    %c0_2 = arith.constant 0 : index
    %3 = vector.load %arg2[%c0, %c0_1, %c0_2] : memref<1x8x32xf32, #tpu.memory_space<vmem>>, vector<1x8x32xf32>
    %4 = vector.shape_cast %3 : vector<1x8x32xf32> to vector<8x32xf32>
    %c0_3 = arith.constant 0 : index
    %c0_4 = arith.constant 0 : index
    %5 = vector.load %arg5[%c0_3, %c0_4] : memref<32x128xf32, #tpu.memory_space<vmem>>, vector<32x128xf32>
    %cst = arith.constant dense<0.000000e+00> : vector<8x128xf32>
    %6 = tpu.matmul %4, %5, %cst {dimension_numbers = #tpu.dot_dimension_numbers<[1], [0], [0], [1], [0, 0, 1, 1], [], []>} : vector<8x32xf32>, vector<32x128xf32>, vector<8x128xf32> -> vector<8x128xf32>
    %c0_5 = arith.constant 0 : index
    %c0_6 = arith.constant 0 : index
    %7 = vector.load %arg6[%c0_5, %c0_6] : memref<1x128xf32, #tpu.memory_space<vmem>>, vector<1x128xf32>
    %8 = vector.broadcast %7 : vector<1x128xf32> to vector<8x128xf32>
    %9 = arith.addf %6, %8 : vector<8x128xf32>
    %c0_7 = arith.constant 0 : index
    %c0_8 = arith.constant 0 : index
    %c0_9 = arith.constant 0 : index
    %10 = vector.load %arg10[%c0_7, %c0_8, %c0_9] : memref<1x128x8xf32, #tpu.memory_space<vmem>>, vector<1x128x8xf32>
    %11 = vector.shape_cast %10 : vector<1x128x8xf32> to vector<128x8xf32>
    %cst_10 = arith.constant dense<0.000000e+00> : vector<8x8xf32>
    %12 = tpu.matmul %9, %11, %cst_10 {dimension_numbers = #tpu.dot_dimension_numbers<[1], [0], [0], [1], [0, 0, 1, 1], [], []>} : vector<8x128xf32>, vector<128x8xf32>, vector<8x8xf32> -> vector<8x8xf32>
    %cst_11 = arith.constant dense<0xFF800000> : vector<8xf32>
    %13 = vector.multi_reduction <maximumf>, %12, %cst_11 [1] : vector<8x8xf32> to vector<8xf32>
    %14 = vector.shape_cast %13 : vector<8xf32> to vector<8x1xf32>
    %15 = vector.broadcast %14 : vector<8x1xf32> to vector<8x8xf32>
    %16 = arith.subf %12, %15 : vector<8x8xf32>
    %17 = math.exp %16 : vector<8x8xf32>
    %cst_12 = arith.constant dense<0.000000e+00> : vector<8xf32>
    %18 = vector.multi_reduction <add>, %17, %cst_12 [1] : vector<8x8xf32> to vector<8xf32>
    %19 = vector.shape_cast %18 : vector<8xf32> to vector<8x1xf32>
    %c0_13 = arith.constant 0 : index
    %c0_14 = arith.constant 0 : index
    %c0_15 = arith.constant 0 : index
    %20 = vector.load %arg11[%c0_13, %c0_14, %c0_15] : memref<1x8x128xf32, #tpu.memory_space<vmem>>, vector<1x8x128xf32>
    %21 = vector.shape_cast %20 : vector<1x8x128xf32> to vector<8x128xf32>
    %cst_16 = arith.constant dense<0.000000e+00> : vector<8x128xf32>
    %22 = tpu.matmul %17, %21, %cst_16 {dimension_numbers = #tpu.dot_dimension_numbers<[1], [0], [0], [1], [0, 0, 1, 1], [], []>} : vector<8x8xf32>, vector<8x128xf32>, vector<8x128xf32> -> vector<8x128xf32>
    %23 = tpu.reciprocal %19 {approx = true} : vector<8x1xf32> -> vector<8x1xf32>
    %24 = vector.broadcast %23 : vector<8x1xf32> to vector<8x128xf32>
    %25 = arith.mulf %22, %24 : vector<8x128xf32>
    %c0_17 = arith.constant 0 : index
    %c0_18 = arith.constant 0 : index
    %c0_19 = arith.constant 0 : index
    %26 = vector.load %arg9[%c0_17, %c0_18, %c0_19] : memref<1x8x128xf32, #tpu.memory_space<vmem>>, vector<1x8x128xf32>
    %27 = vector.shape_cast %26 : vector<1x8x128xf32> to vector<8x128xf32>
    %28 = vector.shape_cast %25 : vector<8x128xf32> to vector<1x8x128xf32>
    tpu.vector_store %arg9[%c0_17, %c0_18, %c0_19], %28 {strides = array<i32>} : memref<1x8x128xf32, #tpu.memory_space<vmem>>, vector<1x8x128xf32>,
    return
  }
  func.func @transform_0(%arg0: i32, %arg1: i32) -> (i32, i32, i32) {
    %c0_i32 = arith.constant 0 : i32
    %c0_i32_0 = arith.constant 0 : i32
    return %arg0, %arg1, %c0_i32 : i32, i32, i32
  }
  func.func @transform_1(%arg0: i32, %arg1: i32) -> (i32, i32, i32) {
    %c0_i32 = arith.constant 0 : i32
    %c0_i32_0 = arith.constant 0 : i32
    %c0_i32_1 = arith.constant 0 : i32
    return %arg0, %c0_i32, %c0_i32_0 : i32, i32, i32
  }
  func.func @transform_2(%arg0: i32, %arg1: i32) -> (i32, i32, i32) {
    %c0_i32 = arith.constant 0 : i32
    %c0_i32_0 = arith.constant 0 : i32
    %c0_i32_1 = arith.constant 0 : i32
    return %arg0, %c0_i32, %c0_i32_0 : i32, i32, i32
  }
  func.func @transform_3(%arg0: i32, %arg1: i32) -> (i32, i32) {
    %c0_i32 = arith.constant 0 : i32
    %c0_i32_0 = arith.constant 0 : i32
    %c0_i32_1 = arith.constant 0 : i32
    return %c0_i32, %c0_i32_0 : i32, i32
  }
  func.func @transform_4(%arg0: i32, %arg1: i32) -> (i32, i32) {
    %c0_i32 = arith.constant 0 : i32
    %c0_i32_0 = arith.constant 0 : i32
    %c0_i32_1 = arith.constant 0 : i32
    return %c0_i32, %c0_i32_0 : i32, i32
  }
  func.func @transform_5(%arg0: i32, %arg1: i32) -> (i32, i32) {
    %c0_i32 = arith.constant 0 : i32
    %c0_i32_0 = arith.constant 0 : i32
    %c0_i32_1 = arith.constant 0 : i32
    return %c0_i32, %c0_i32_0 : i32, i32
  }
  func.func @transform_6(%arg0: i32, %arg1: i32) -> (i32, i32) {
    %c0_i32 = arith.constant 0 : i32
    %c0_i32_0 = arith.constant 0 : i32
    %c0_i32_1 = arith.constant 0 : i32
    return %c0_i32, %c0_i32_0 : i32, i32
  }
  func.func @transform_7(%arg0: i32, %arg1: i32) -> (i32, i32, i32) {
    %c0_i32 = arith.constant 0 : i32
    %c0_i32_0 = arith.constant 0 : i32
    return %arg0, %arg1, %c0_i32 : i32, i32, i32
  }
}

</mosaic_0001>

<llo_original>
// kernel: tpu_custom_call.1
$region0: #{tpu_custom_call.1}
  #allocation0 [shape = 'u32[]', space=smem, size = 0x4, offset = 0x4, fixed_abs, tag = 'smem constant byte address 0x4 - core index']
  #allocation1 [shape = 'u32[144,128]{1,0:T(1,128)}', space=vmem, size = 0x12000, scoped, tag = 'internal scratch']
  #allocation2 [shape = 'f32[1,128,8]{2,1,0:T(8,128)}', space=vmem, size = 0x10000, scoped, tag = 'scratch operand']
  #allocation3 [shape = 'f32[1,8,128]{2,1,0:T(8,128)}', space=vmem, size = 0x1000, scoped, tag = 'scratch operand']
  %s0 = inlined_call_operand.hbm [shape: f32[2,8,32], index: 0, kind: input, shape index: {}]
  %s1 = inlined_call_operand.hbm [shape: f32[2,8,32], index: 1, kind: input, shape index: {}]
  %s2 = inlined_call_operand.hbm [shape: f32[2,8,32], index: 2, kind: input, shape index: {}]
  %s3 = inlined_call_operand.hbm [shape: f32[32,128], index: 3, kind: input, shape index: {}]
  %s4 = inlined_call_operand.vmem [shape: f32[1,128], index: 4, kind: input, shape index: {}]
  %s5 = inlined_call_operand.hbm [shape: f32[32,256], index: 5, kind: input, shape index: {}]
  %s6 = inlined_call_operand.vmem [shape: f32[1,256], index: 6, kind: input, shape index: {}]
  %s7 = inlined_call_operand.hbm [shape: f32[2,8,128], index: 7, kind: output, shape index: {}]
  %s8 = sld [smem:[#allocation0]]
  $region85: #{tpu_custom_call.1} parent=0
    _
  %s10 = ssub.s32 1, %s8
  %s11 = scalar_select 0, %s10, %s8
  $region1: #{tpu_custom_call.1} parent=0
    #allocation4 [shape = 'u8[8192]{0}', space=vmem, size = 0x2000, scoped, tag = 'input window, operand 0']
    #allocation5 [shape = 's32[2]{0}', space=sflag, size = 0x8, scoped, tag = 'scoped memory for tpu_custom_call.1']
    #allocation6 [shape = 's32[2]{0}', space=sflag, size = 0x8, scoped, tag = 'scoped memory for tpu_custom_call.1']
    #allocation7 [shape = 'u8[8192]{0}', space=vmem, size = 0x2000, scoped, tag = 'input window, operand 1']
    #allocation8 [shape = 's32[2]{0}', space=sflag, size = 0x8, scoped, tag = 'scoped memory for tpu_custom_call.1']
    #allocation9 [shape = 'u8[8192]{0}', space=vmem, size = 0x2000, scoped, tag = 'input window, operand 2']
    #allocation10 [shape = 'u8[16384]{0}', space=vmem, size = 0x4000, scoped, tag = 'input window, operand 3, single buffered']
    #allocation11 [shape = 's32[1]{0}', space=sflag, size = 0x4, scoped, tag = 'scoped memory for tpu_custom_call.1']
    #allocation12 [shape = 'u8[32768]{0}', space=vmem, size = 0x8000, scoped, tag = 'input window, operand 5, single buffered']
    #allocation13 [shape = 'u8[8192]{0}', space=vmem, size = 0x2000, scoped, tag = 'output window, operand 0']
    %12 = vsyncpa [#allocation5], 0
    %s13 = scalar_lea.sflag [#allocation5], 1
    %14 = vsyncpa %s13, 0
    %15 = vsyncpa [#allocation8], 0
    %s16 = scalar_lea.sflag [#allocation8], 1
    %17 = vsyncpa %s16, 0
    %18 = vsyncpa [#allocation11], 0
    %19 = vsyncpa [#allocation6], 0
    %s20 = scalar_lea.sflag [#allocation6], 1
    %21 = vsyncpa %s20, 0
    loop: start=0, step=1, limit=4
    $region2: #{tpu_custom_call.1} parent=1 // loop_pre_header
      _
    $region3: #{tpu_custom_call.1} parent=1 // loop_header
      %s23 = sphi 0, %s27
      %p24 = scmp.ge.s32.totalorder %s23, 4
      %s30 = sphi 0, %s42
      %s31 = sphi 0, %s38
      %s32 = sphi 0, %s30
      %s33 = sphi 0, %s31
      %s34 = sphi 0, %s32
      %s35 = sphi 0, %s33
      %s47 = sphi 0, %s49
      %s50 = sphi 0, %s47
      %s51 = sphi 0, %s50
      %s67 = sphi 0, %s51
      %s73 = sphi 0, %s75
      %s76 = sphi 0, %s73
      %s77 = sphi 0, %s76
      %s93 = sphi 0, %s77
      %s99 = sphi 0, %s101
      %s102 = sphi 0, %s99
      %s103 = sphi 0, %s102
      %s119 = sphi 0, %s103
      %s123 = sphi 0, %s123
      %s125 = sphi 0, %s123
      %s126 = sphi 0, %s125
      %s140 = sphi 0, %s126
      %s144 = sphi 0, %s144
      %s146 = sphi 0, %s144
      %s147 = sphi 0, %s146
      %s161 = sphi 0, %s147
      %s165 = sphi 0, %s165
      %s167 = sphi 0, %s165
      %s168 = sphi 0, %s167
      %s182 = sphi 0, %s168
      %s186 = sphi 0, %s186
      %s188 = sphi 0, %s186
      %s189 = sphi 0, %s188
      %s203 = sphi 0, %s189
      %s211 = sphi 0, %s213
      %s214 = sphi 0, %s211
      %s215 = sphi 0, %s214
      %s231 = sphi 0, %s215
    $region4: #{tpu_custom_call.1} parent=1 // loop_header_branch
      %26 = sbr.rel (%p24) target = $region8
    $region5: #{tpu_custom_call.1} parent=1 // loop_body
      %s28 = ssub.s32 %s23, 1
      %s29 = ssub.s32 %s23, 2
      %s36 = sadd.s32 1, %s31
      %p37 = scmp.ge.s32.totalorder %s36, 1
      %s38 = scalar_select %p37, 0, %s36
      %s39 = sadd.s32 1, %s30
      %s40 = scalar_select %p37, %s39, %s30
      %p41 = scmp.ge.s32.totalorder %s40, 2
      %s42 = scalar_select %p41, 0, %s40
      %s43 = ssub.s32 %s30, %s42
      %s44 = ssub.s32 %s31, %s38
      %s45 = sor.u32 %s43, %s44
      %p46 = scmp.eq.s32.totalorder %s45, 0
      %s48 = sadd.s32 %s47, 1
      %s49 = scalar_select %p46, %s47, %s48
      %p52 = pneg %p46
      %p53 = scmp.eq.s32.totalorder %s23, 1
      %p54 = por %p52, %p53
      %p55 = scmp.ne.s32.totalorder %s47, %s50
      %p56 = scmp.eq.s32.totalorder %s23, 0
      %p57 = por %p55, %p56
      %p58 = scmp.ne.s32.totalorder %s47, %s50
      %p59 = scmp.eq.s32.totalorder %s28, 1
      %p60 = por %p58, %p59
      %p61 = scmp.ne.s32.totalorder %s50, %s51
      %p62 = scmp.eq.s32.totalorder %s28, 0
      %p63 = por %p61, %p62
      %p64 = scmp.ne.s32.totalorder %s50, %s51
      %p65 = scmp.eq.s32.totalorder %s29, 1
      %p66 = por %p64, %p65
      %p68 = scmp.ne.s32.totalorder %s51, %s67
      %p69 = scmp.eq.s32.totalorder %s29, 0
      %p70 = por %p68, %p69
      %s71 = ssub.s32 %s30, %s42
      %p72 = scmp.eq.s32.totalorder %s71, 0
      %s74 = sadd.s32 %s73, 1
      %s75 = scalar_select %p72, %s73, %s74
      %p78 = pneg %p72
      %p79 = scmp.eq.s32.totalorder %s23, 1
      %p80 = por %p78, %p79
      %p81 = scmp.ne.s32.totalorder %s73, %s76
      %p82 = scmp.eq.s32.totalorder %s23, 0
      %p83 = por %p81, %p82
      %p84 = scmp.ne.s32.totalorder %s73, %s76
      %p85 = scmp.eq.s32.totalorder %s28, 1
      %p86 = por %p84, %p85
      %p87 = scmp.ne.s32.totalorder %s76, %s77
      %p88 = scmp.eq.s32.totalorder %s28, 0
      %p89 = por %p87, %p88
      %p90 = scmp.ne.s32.totalorder %s76, %s77
      %p91 = scmp.eq.s32.totalorder %s29, 1
      %p92 = por %p90, %p91
      %p94 = scmp.ne.s32.totalorder %s77, %s93
      %p95 = scmp.eq.s32.totalorder %s29, 0
      %p96 = por %p94, %p95
      %s97 = ssub.s32 %s30, %s42
      %p98 = scmp.eq.s32.totalorder %s97, 0
      %s100 = sadd.s32 %s99, 1
      %s101 = scalar_select %p98, %s99, %s100
      %p104 = pneg %p98
      %p105 = scmp.eq.s32.totalorder %s23, 1
      %p106 = por %p104, %p105
      %p107 = scmp.ne.s32.totalorder %s99, %s102
      %p108 = scmp.eq.s32.totalorder %s23, 0
      %p109 = por %p107, %p108
      %p110 = scmp.ne.s32.totalorder %s99, %s102
      %p111 = scmp.eq.s32.totalorder %s28, 1
      %p112 = por %p110, %p111
      %p113 = scmp.ne.s32.totalorder %s102, %s103
      %p114 = scmp.eq.s32.totalorder %s28, 0
      %p115 = por %p113, %p114
      %p116 = scmp.ne.s32.totalorder %s102, %s103
      %p117 = scmp.eq.s32.totalorder %s29, 1
      %p118 = por %p116, %p117
      %p120 = scmp.ne.s32.totalorder %s103, %s119
      %p121 = scmp.eq.s32.totalorder %s29, 0
      %p122 = por %p120, %p121
      %s124 = sadd.s32 %s123, 1
      %p127 = scmp.eq.s32.totalorder %s23, 1
      %p128 = scmp.ne.s32.totalorder %s123, %s125
      %p129 = scmp.eq.s32.totalorder %s23, 0
      %p130 = por %p128, %p129
      %p131 = scmp.ne.s32.totalorder %s123, %s125
      %p132 = scmp.eq.s32.totalorder %s28, 1
      %p133 = por %p131, %p132
      %p134 = scmp.ne.s32.totalorder %s125, %s126
      %p135 = scmp.eq.s32.totalorder %s28, 0
      %p136 = por %p134, %p135
      %p137 = scmp.ne.s32.totalorder %s125, %s126
      %p138 = scmp.eq.s32.totalorder %s29, 1
      %p139 = por %p137, %p138
      %p141 = scmp.ne.s32.totalorder %s126, %s140
      %p142 = scmp.eq.s32.totalorder %s29, 0
      %p143 = por %p141, %p142
      %s145 = sadd.s32 %s144, 1
      %p148 = scmp.eq.s32.totalorder %s23, 1
      %p149 = scmp.ne.s32.totalorder %s144, %s146
      %p150 = scmp.eq.s32.totalorder %s23, 0
      %p151 = por %p149, %p150
      %p152 = scmp.ne.s32.totalorder %s144, %s146
      %p153 = scmp.eq.s32.totalorder %s28, 1
      %p154 = por %p152, %p153
      %p155 = scmp.ne.s32.totalorder %s146, %s147
      %p156 = scmp.eq.s32.totalorder %s28, 0
      %p157 = por %p155, %p156
      %p158 = scmp.ne.s32.totalorder %s146, %s147
      %p159 = scmp.eq.s32.totalorder %s29, 1
      %p160 = por %p158, %p159
      %p162 = scmp.ne.s32.totalorder %s147, %s161
      %p163 = scmp.eq.s32.totalorder %s29, 0
      %p164 = por %p162, %p163
      %s166 = sadd.s32 %s165, 1
      %p169 = scmp.eq.s32.totalorder %s23, 1
      %p170 = scmp.ne.s32.totalorder %s165, %s167
      %p171 = scmp.eq.s32.totalorder %s23, 0
      %p172 = por %p170, %p171
      %p173 = scmp.ne.s32.totalorder %s165, %s167
      %p174 = scmp.eq.s32.totalorder %s28, 1
      %p175 = por %p173, %p174
      %p176 = scmp.ne.s32.totalorder %s167, %s168
      %p177 = scmp.eq.s32.totalorder %s28, 0
      %p178 = por %p176, %p177
      %p179 = scmp.ne.s32.totalorder %s167, %s168
      %p180 = scmp.eq.s32.totalorder %s29, 1
      %p181 = por %p179, %p180
      %p183 = scmp.ne.s32.totalorder %s168, %s182
      %p184 = scmp.eq.s32.totalorder %s29, 0
      %p185 = por %p183, %p184
      %s187 = sadd.s32 %s186, 1
      %p190 = scmp.eq.s32.totalorder %s23, 1
      %p191 = scmp.ne.s32.totalorder %s186, %s188
      %p192 = scmp.eq.s32.totalorder %s23, 0
      %p193 = por %p191, %p192
      %p194 = scmp.ne.s32.totalorder %s186, %s188
      %p195 = scmp.eq.s32.totalorder %s28, 1
      %p196 = por %p194, %p195
      %p197 = scmp.ne.s32.totalorder %s188, %s189
      %p198 = scmp.eq.s32.totalorder %s28, 0
      %p199 = por %p197, %p198
      %p200 = scmp.ne.s32.totalorder %s188, %s189
      %p201 = scmp.eq.s32.totalorder %s29, 1
      %p202 = por %p200, %p201
      %p204 = scmp.ne.s32.totalorder %s189, %s203
      %p205 = scmp.eq.s32.totalorder %s29, 0
      %p206 = por %p204, %p205
      %s207 = ssub.s32 %s30, %s42
      %s208 = ssub.s32 %s31, %s38
      %s209 = sor.u32 %s207, %s208
      %p210 = scmp.eq.s32.totalorder %s209, 0
      %s212 = sadd.s32 %s211, 1
      %s213 = scalar_select %p210, %s211, %s212
      %p216 = pneg %p210
      %p217 = scmp.eq.s32.totalorder %s23, 1
      %p218 = por %p216, %p217
      %p219 = scmp.ne.s32.totalorder %s211, %s214
      %p220 = scmp.eq.s32.totalorder %s23, 0
      %p221 = por %p219, %p220
      %p222 = scmp.ne.s32.totalorder %s211, %s214
      %p223 = scmp.eq.s32.totalorder %s28, 1
      %p224 = por %p222, %p223
      %p225 = scmp.ne.s32.totalorder %s214, %s215
      %p226 = scmp.eq.s32.totalorder %s28, 0
      %p227 = por %p225, %p226
      %p228 = scmp.ne.s32.totalorder %s214, %s215
      %p229 = scmp.eq.s32.totalorder %s29, 1
      %p230 = por %p228, %p229
      %p232 = scmp.ne.s32.totalorder %s215, %s231
      %p233 = scmp.eq.s32.totalorder %s29, 0
      %p234 = por %p232, %p233
      %p235 = scmp.le.s32.totalorder 1, %s23
      %p236 = scmp.lt.s32.totalorder %s23, 3
      %p237 = pnand %p235, %p236
      %p238 = pneg %p237
      // Predicated region
      $region9: #{tpu_custom_call.1} parent=5 // pred_check
        _
      $region10: #{tpu_custom_call.1} parent=5 // pred_check_branch
        %240 = sbr.rel (%p237) target = $region12
      $region11: #{tpu_custom_call.1} parent=5 // pred_region
        %s241 = ssub.s32 %s23, 1
        // Predicated region
        $region13: #{tpu_custom_call.1} parent=11 // pred_check
          %p242 = pneg %p136
        $region14: #{tpu_custom_call.1} parent=11 // pred_check_branch
          %244 = sbr.rel (%p242) target = $region16
        $region15: #{tpu_custom_call.1} parent=11 // pred_region
          %s246 = ssub.s32 512, 512
          %247 = vsyncadd [#allocation11], %s246
          %s248 = sshll.u32 [#allocation10], 4
          %s249 = int_to_ptr.vmem [resolvable:$true] %s248
          %254 = dma.hbm_to_vmem [thread:$0]  %s3, 512, %s249, [#allocation11], 128, 128, 8
        $region16: #{tpu_custom_call.1} parent=11 // pred_fallthru
          _
        // Predicated region
        $region17: #{tpu_custom_call.1} parent=11 // pred_check
          %p255 = pneg %p157
        $region18: #{tpu_custom_call.1} parent=11 // pred_check_branch
          %257 = sbr.rel (%p255) target = $region20
        $region19: #{tpu_custom_call.1} parent=11 // pred_region
          _
        $region20: #{tpu_custom_call.1} parent=11 // pred_fallthru
          _
        // Predicated region
        $region21: #{tpu_custom_call.1} parent=11 // pred_check
          %p258 = pneg %p178
        $region22: #{tpu_custom_call.1} parent=11 // pred_check_branch
          %260 = sbr.rel (%p258) target = $region24
        $region23: #{tpu_custom_call.1} parent=11 // pred_region
          %s262 = ssub.s32 1024, 1024
          %263 = vsyncadd [#allocation11], %s262
          %s264 = sshll.u32 [#allocation12], 4
          %s265 = int_to_ptr.vmem [resolvable:$true] %s264
          %270 = dma.hbm_to_vmem [thread:$0]  %s5, 1024, %s265, [#allocation11], 256, 256, 16
        $region24: #{tpu_custom_call.1} parent=11 // pred_fallthru
          _
        // Predicated region
        $region25: #{tpu_custom_call.1} parent=11 // pred_check
          %p271 = pneg %p199
        $region26: #{tpu_custom_call.1} parent=11 // pred_check_branch
          %273 = sbr.rel (%p271) target = $region28
        $region27: #{tpu_custom_call.1} parent=11 // pred_region
          _
        $region28: #{tpu_custom_call.1} parent=11 // pred_fallthru
          _
      $region12: #{tpu_custom_call.1} parent=5 // pred_fallthru
        _
      %p274 = scmp.lt.s32.totalorder %s23, 2
      // Predicated region
      $region29: #{tpu_custom_call.1} parent=5 // pred_check
        %p275 = pneg %p274
      $region30: #{tpu_custom_call.1} parent=5 // pred_check_branch
        %277 = sbr.rel (%p275) target = $region32
      $region31: #{tpu_custom_call.1} parent=5 // pred_region
        // Predicated region
        $region33: #{tpu_custom_call.1} parent=31 // pred_check
          %p278 = pneg %p57
        $region34: #{tpu_custom_call.1} parent=31 // pred_check_branch
          %280 = sbr.rel (%p278) target = $region36
        $region35: #{tpu_custom_call.1} parent=31 // pred_region
          %s281 = sand.u32 %s47, 1
          %s282 = scalar_lea.sflag [#allocation5], %s281
          %s283 = sand.u32 %s47, 1
          %s284 = smul.addr %s283, 8
          %s285 = scalar_lea.vmem [#allocation4], %s284
          %s287 = ssub.s32 128, 128
          %288 = vsyncadd %s282, %s287
          %s289 = sadd.s32 %s31, %s30
          %s290 = smul.addr %s289, 128
          %s291 = scalar_lea.hbm %s0, %s290
          %s293 = sshll.u32 %s285, 4
          %s294 = int_to_ptr.vmem [resolvable:$true] %s293
          %296 = dma.hbm_to_vmem [thread:$0]  %s291, 128, %s294, %s282
        $region36: #{tpu_custom_call.1} parent=31 // pred_fallthru
          _
        // Predicated region
        $region37: #{tpu_custom_call.1} parent=31 // pred_check
          %p297 = pneg %p83
        $region38: #{tpu_custom_call.1} parent=31 // pred_check_branch
          %299 = sbr.rel (%p297) target = $region40
        $region39: #{tpu_custom_call.1} parent=31 // pred_region
          %s300 = sand.u32 %s23, 1
          %s301 = scalar_lea.sflag [#allocation8], %s300
          %s302 = sand.u32 %s73, 1
          %s303 = smul.addr %s302, 8
          %s304 = scalar_lea.vmem [#allocation7], %s303
          %s306 = ssub.s32 128, 128
          %307 = vsyncadd %s301, %s306
          %s308 = smul.addr %s30, 128
          %s309 = scalar_lea.hbm %s1, %s308
          %s311 = sshll.u32 %s304, 4
          %s312 = int_to_ptr.vmem [resolvable:$true] %s311
          %314 = dma.hbm_to_vmem [thread:$0]  %s309, 128, %s312, %s301
        $region40: #{tpu_custom_call.1} parent=31 // pred_fallthru
          _
        // Predicated region
        $region41: #{tpu_custom_call.1} parent=31 // pred_check
          %p315 = pneg %p109
        $region42: #{tpu_custom_call.1} parent=31 // pred_check_branch
          %317 = sbr.rel (%p315) target = $region44
        $region43: #{tpu_custom_call.1} parent=31 // pred_region
          %s318 = sand.u32 %s23, 1
          %s319 = scalar_lea.sflag [#allocation8], %s318
          %s320 = sand.u32 %s99, 1
          %s321 = smul.addr %s320, 8
          %s322 = scalar_lea.vmem [#allocation9], %s321
          %s324 = ssub.s32 128, 128
          %325 = vsyncadd %s319, %s324
          %s326 = smul.addr %s30, 128
          %s327 = scalar_lea.hbm %s2, %s326
          %s329 = sshll.u32 %s322, 4
          %s330 = int_to_ptr.vmem [resolvable:$true] %s329
          %332 = dma.hbm_to_vmem [thread:$0]  %s327, 128, %s330, %s319
        $region44: #{tpu_custom_call.1} parent=31 // pred_fallthru
          _
      $region32: #{tpu_custom_call.1} parent=5 // pred_fallthru
        _
      %p333 = scmp.le.s32.totalorder 1, %s23
      %p334 = scmp.lt.s32.totalorder %s23, 3
      %p335 = pnand %p333, %p334
      %p336 = pneg %p335
      // Predicated region
      $region45: #{tpu_custom_call.1} parent=5 // pred_check
        _
      $region46: #{tpu_custom_call.1} parent=5 // pred_check_branch
        %338 = sbr.rel (%p335) target = $region48
      $region47: #{tpu_custom_call.1} parent=5 // pred_region
        %s339 = ssub.s32 %s23, 1
        %s340 = sand.u32 %s50, 1
        %s341 = scalar_lea.sflag [#allocation5], %s340
        %s342 = sand.u32 %s50, 1
        %s343 = smul.addr %s342, 8
        %s344 = scalar_lea.vmem [#allocation4], %s343
        // Predicated region
        $region49: #{tpu_custom_call.1} parent=47 // pred_check
          %p345 = pneg %p63
        $region50: #{tpu_custom_call.1} parent=47 // pred_check_branch
          %347 = sbr.rel (%p345) target = $region52
        $region51: #{tpu_custom_call.1} parent=47 // pred_region
          %348 = dma.done %s341, 128
        $region52: #{tpu_custom_call.1} parent=47 // pred_fallthru
          _
        %s349 = sand.u32 %s28, 1
        %s350 = scalar_lea.sflag [#allocation8], %s349
        %s351 = sand.u32 %s76, 1
        %s352 = smul.addr %s351, 8
        %s353 = scalar_lea.vmem [#allocation7], %s352
        // Predicated region
        $region53: #{tpu_custom_call.1} parent=47 // pred_check
          %p354 = pneg %p89
        $region54: #{tpu_custom_call.1} parent=47 // pred_check_branch
          %356 = sbr.rel (%p354) target = $region56
        $region55: #{tpu_custom_call.1} parent=47 // pred_region
          %357 = dma.done %s350, 128
        $region56: #{tpu_custom_call.1} parent=47 // pred_fallthru
          _
        %s358 = sand.u32 %s28, 1
        %s359 = scalar_lea.sflag [#allocation8], %s358
        %s360 = sand.u32 %s102, 1
        %s361 = smul.addr %s360, 8
        %s362 = scalar_lea.vmem [#allocation9], %s361
        // Predicated region
        $region57: #{tpu_custom_call.1} parent=47 // pred_check
          %p363 = pneg %p115
        $region58: #{tpu_custom_call.1} parent=47 // pred_check_branch
          %365 = sbr.rel (%p363) target = $region60
        $region59: #{tpu_custom_call.1} parent=47 // pred_region
          %366 = dma.done %s359, 128
        $region60: #{tpu_custom_call.1} parent=47 // pred_fallthru
          _
        // Predicated region
        $region61: #{tpu_custom_call.1} parent=47 // pred_check
          %p367 = pneg %p136
        $region62: #{tpu_custom_call.1} parent=47 // pred_check_branch
          %369 = sbr.rel (%p367) target = $region64
        $region63: #{tpu_custom_call.1} parent=47 // pred_region
          %370 = dma.done [#allocation11], 512
        $region64: #{tpu_custom_call.1} parent=47 // pred_fallthru
          _
        // Predicated region
        $region65: #{tpu_custom_call.1} parent=47 // pred_check
          %p371 = pneg %p178
        $region66: #{tpu_custom_call.1} parent=47 // pred_check_branch
          %373 = sbr.rel (%p371) target = $region68
        $region67: #{tpu_custom_call.1} parent=47 // pred_region
          %374 = dma.done [#allocation11], 1024
        $region68: #{tpu_custom_call.1} parent=47 // pred_fallthru
          _
        %s375 = sand.u32 %s50, 1
        %s376 = scalar_lea.sflag [#allocation5], %s375
        %s377 = sand.u32 %s50, 1
        %s378 = smul.addr %s377, 8
        %s379 = scalar_lea.vmem [#allocation4], %s378
        %p380 = pneg %p63
        %p381 = pneg %p60
        %s382 = sand.u32 %s28, 1
        %s383 = scalar_lea.sflag [#allocation8], %s382
        %s384 = sand.u32 %s76, 1
        %s385 = smul.addr %s384, 8
        %s386 = scalar_lea.vmem [#allocation7], %s385
        %p387 = pneg %p89
        %p388 = pneg %p86
        %s389 = sand.u32 %s28, 1
        %s390 = scalar_lea.sflag [#allocation8], %s389
        %s391 = sand.u32 %s102, 1
        %s392 = smul.addr %s391, 8
        %s393 = scalar_lea.vmem [#allocation9], %s392
        %p394 = pneg %p115
        %p395 = pneg %p112
        %p396 = pneg %p136
        %p397 = pneg %p133
        %p398 = pneg %p157
        %p399 = pneg %p154
        %p400 = pneg %p178
        %p401 = pneg %p175
        %p402 = pneg %p199
        %p403 = pneg %p196
        %p404 = pneg %p227
        %p405 = pneg %p224
        %s406 = sand.u32 %s214, 1
        %s407 = scalar_lea.sflag [#allocation6], %s406
        %s408 = sand.u32 %s214, 1
        %s409 = smul.addr %s408, 8
        %s410 = scalar_lea.vmem [#allocation13], %s409
        %p411 = scmp.eq.s32.totalorder %s33, 0
        // Predicated region
        $region69: #{tpu_custom_call.1} parent=47 // pred_check
          %p412 = pneg %p411
        $region70: #{tpu_custom_call.1} parent=47 // pred_check_branch
          %414 = sbr.rel (%p412) target = $region72
        $region71: #{tpu_custom_call.1} parent=47 // pred_region
          %v415 = vld [vmem:[%s353] sm:$0xff]
          %v416 = vld [vmem:[#allocation12] sm:$0xff]
          %v417 = vld [vmem:[#allocation12 + $0x10] sm:$0xff]
          %v418 = vld [vmem:[#allocation12 + $0x20] sm:$0xff]
          %v419 = vld [vmem:[#allocation12 + $0x30] sm:$0xff]
          %v420 = vld [vmem:[%s6] sm:$0x1]
          %v422 = vlaneseq
          %v423 = vshrl.u32 %v422, 7
          %v424 = vsub.s32 0, %v423
          %v425 = vrot.slane %v420, %v424
          %vm427 = vcmask 261120
          %v429 = vsel %vm427, %v415, 0
          %431 = vmatprep.subr.mxu0 0.0
          %432 = vmatpush1.msra.mxu0 %v416
          %433 = vmatprep.subr.mxu0 0.0
          %434 = vmatpush1.msra.mxu0 %v417
          %435 = vmatprep.subr.mxu0 0.0
          %436 = vmatpush1.msra.mxu0 %v418
          %437 = vmatprep.subr.mxu0 0.0
          %438 = vmatpush1.msra.mxu0 %v419
          %439 = vmatprep.subr.mxu0 0.0
          %440 = vmatpush1.msra.mxu0 0.0
          %441 = vmatprep.subr.mxu0 0.0
          %442 = vmatpush1.msra.mxu0 0.0
          %443 = vmatprep.subr.mxu0 0.0
          %444 = vmatpush1.msra.mxu0 0.0
          %445 = vmatprep.subr.mxu0 0.0
          %446 = vmatpush1.msra.mxu0 0.0
          %447 = vmatprep.subr.mxu0 0.0
          %448 = vmatpush1.msra.mxu0 0.0
          %449 = vmatprep.subr.mxu0 0.0
          %450 = vmatpush1.msra.mxu0 0.0
          %451 = vmatprep.subr.mxu0 0.0
          %452 = vmatpush1.msra.mxu0 0.0
          %453 = vmatprep.subr.mxu0 0.0
          %454 = vmatpush1.msra.mxu0 0.0
          %455 = vmatprep.subr.mxu0 0.0
          %456 = vmatpush1.msra.mxu0 0.0
          %457 = vmatprep.subr.mxu0 0.0
          %458 = vmatpush1.msra.mxu0 0.0
          %459 = vmatprep.subr.mxu0 0.0
          %460 = vmatpush1.msra.mxu0 0.0
          %461 = vmatprep.subr.mxu0 0.0
          %462 = vmatpush1.msra.mxu0 0.0
          %463 = vmatprep.subr.mxu0 0.0
          %464 = vmatpush1.msra.mxu0 0.0
          %465 = vmatprep.subr.mxu0 0.0
          %466 = vmatpush1.msra.mxu0 0.0
          %467 = vmatprep.subr.mxu0 0.0
          %468 = vmatpush1.msra.mxu0 0.0
          %469 = vmatprep.subr.mxu0 0.0
          %470 = vmatpush1.msra.mxu0 0.0
          %471 = vmatprep.subr.mxu0 0.0
          %472 = vmatpush1.msra.mxu0 0.0
          %473 = vmatprep.subr.mxu0 0.0
          %474 = vmatpush1.msra.mxu0 0.0
          %475 = vmatprep.subr.mxu0 0.0
          %476 = vmatpush1.msra.mxu0 0.0
          %477 = vmatprep.subr.mxu0 0.0
          %478 = vmatpush1.msra.mxu0 0.0
          %479 = vmatprep.subr.mxu0 0.0
          %480 = vmatpush1.msra.mxu0 0.0
          %481 = vmatprep.subr.mxu0 0.0
          %482 = vmatpush1.msra.mxu0 0.0
          %483 = vmatprep.subr.mxu0 0.0
          %484 = vmatpush1.msra.mxu0 0.0
          %485 = vmatprep.subr.mxu0 0.0
          %486 = vmatpush1.msra.mxu0 0.0
          %487 = vmatprep.subr.mxu0 0.0
          %488 = vmatpush1.msra.mxu0 0.0
          %489 = vmatprep.subr.mxu0 0.0
          %490 = vmatpush1.msra.mxu0 0.0
          %491 = vmatprep.subr.mxu0 0.0
          %492 = vmatpush1.msra.mxu0 0.0
          %493 = vmatprep.subr.mxu0 0.0
          %494 = vmatpush1.msra.mxu0 0.0
          %495 = vmatprep.mubr.f32.mxu0 0.0
          %496 = vmatmul.mubr.f32.gmra.mrb[0].mxu0 %v429
          %v497 = vpop.f32.mrb[0].mxu0
          %v498 = vadd.f32 %v425, %v497
          %v499 = vpop.f32.mrb[0].mxu0
          %500 = vdwg.mxu0
          %v501 = vld [vmem:[%s362] sm:$0xff]
          %v502 = vld [vmem:[#allocation12 + $0x8] sm:$0xff]
          %v503 = vld [vmem:[#allocation12 + $0x18] sm:$0xff]
          %v504 = vld [vmem:[#allocation12 + $0x28] sm:$0xff]
          %v505 = vld [vmem:[#allocation12 + $0x38] sm:$0xff]
          %v506 = vld [vmem:[%s6 + $0x1] sm:$0x1]
          %v508 = vlaneseq
          %v509 = vshrl.u32 %v508, 7
          %v510 = vsub.s32 0, %v509
          %v511 = vrot.slane %v506, %v510
          %v514 = vsel %vm427, %v501, 0
          %516 = vmatprep.subr.mxu0 0.0
          %517 = vmatpush1.msra.mxu0 %v502
          %518 = vmatprep.subr.mxu0 0.0
          %519 = vmatpush1.msra.mxu0 %v503
          %520 = vmatprep.subr.mxu0 0.0
          %521 = vmatpush1.msra.mxu0 %v504
          %522 = vmatprep.subr.mxu0 0.0
          %523 = vmatpush1.msra.mxu0 %v505
          %524 = vmatprep.subr.mxu0 0.0
          %525 = vmatpush1.msra.mxu0 0.0
          %526 = vmatprep.subr.mxu0 0.0
          %527 = vmatpush1.msra.mxu0 0.0
          %528 = vmatprep.subr.mxu0 0.0
          %529 = vmatpush1.msra.mxu0 0.0
          %530 = vmatprep.subr.mxu0 0.0
          %531 = vmatpush1.msra.mxu0 0.0
          %532 = vmatprep.subr.mxu0 0.0
          %533 = vmatpush1.msra.mxu0 0.0
          %534 = vmatprep.subr.mxu0 0.0
          %535 = vmatpush1.msra.mxu0 0.0
          %536 = vmatprep.subr.mxu0 0.0
          %537 = vmatpush1.msra.mxu0 0.0
          %538 = vmatprep.subr.mxu0 0.0
          %539 = vmatpush1.msra.mxu0 0.0
          %540 = vmatprep.subr.mxu0 0.0
          %541 = vmatpush1.msra.mxu0 0.0
          %542 = vmatprep.subr.mxu0 0.0
          %543 = vmatpush1.msra.mxu0 0.0
          %544 = vmatprep.subr.mxu0 0.0
          %545 = vmatpush1.msra.mxu0 0.0
          %546 = vmatprep.subr.mxu0 0.0
          %547 = vmatpush1.msra.mxu0 0.0
          %548 = vmatprep.subr.mxu0 0.0
          %549 = vmatpush1.msra.mxu0 0.0
          %550 = vmatprep.subr.mxu0 0.0
          %551 = vmatpush1.msra.mxu0 0.0
          %552 = vmatprep.subr.mxu0 0.0
          %553 = vmatpush1.msra.mxu0 0.0
          %554 = vmatprep.subr.mxu0 0.0
          %555 = vmatpush1.msra.mxu0 0.0
          %556 = vmatprep.subr.mxu0 0.0
          %557 = vmatpush1.msra.mxu0 0.0
          %558 = vmatprep.subr.mxu0 0.0
          %559 = vmatpush1.msra.mxu0 0.0
          %560 = vmatprep.subr.mxu0 0.0
          %561 = vmatpush1.msra.mxu0 0.0
          %562 = vmatprep.subr.mxu0 0.0
          %563 = vmatpush1.msra.mxu0 0.0
          %564 = vmatprep.subr.mxu0 0.0
          %565 = vmatpush1.msra.mxu0 0.0
          %566 = vmatprep.subr.mxu0 0.0
          %567 = vmatpush1.msra.mxu0 0.0
          %568 = vmatprep.subr.mxu0 0.0
          %569 = vmatpush1.msra.mxu0 0.0
          %570 = vmatprep.subr.mxu0 0.0
          %571 = vmatpush1.msra.mxu0 0.0
          %572 = vmatprep.subr.mxu0 0.0
          %573 = vmatpush1.msra.mxu0 0.0
          %574 = vmatprep.subr.mxu0 0.0
          %575 = vmatpush1.msra.mxu0 0.0
          %576 = vmatprep.subr.mxu0 0.0
          %577 = vmatpush1.msra.mxu0 0.0
          %578 = vmatprep.subr.mxu0 0.0
          %579 = vmatpush1.msra.mxu0 0.0
          %580 = vmatprep.mubr.f32.mxu0 0.0
          %581 = vmatmul.mubr.f32.gmra.mrb[0].mxu0 %v514
          %v582 = vpop.f32.mrb[0].mxu0
          %v583 = vadd.f32 %v511, %v582
          %v584 = vpop.f32.mrb[0].mxu0
          %585 = vdwg.mxu0
          %586 = vxpose.xlu0.b32.start [1/16] %v498, 128
          %587 = vxpose.xlu0.b32.cont [2/16] 0.0, 128
          %588 = vxpose.xlu0.b32.cont [3/16] 0.0, 128
          %589 = vxpose.xlu0.b32.cont [4/16] 0.0, 128
          %590 = vxpose.xlu0.b32.cont [5/16] 0.0, 128
          %591 = vxpose.xlu0.b32.cont [6/16] 0.0, 128
          %592 = vxpose.xlu0.b32.cont [7/16] 0.0, 128
          %593 = vxpose.xlu0.b32.cont [8/16] 0.0, 128
          %594 = vxpose.xlu0.b32.cont [9/16] 0.0, 128
          %595 = vxpose.xlu0.b32.cont [10/16] 0.0, 128
          %596 = vxpose.xlu0.b32.cont [11/16] 0.0, 128
          %597 = vxpose.xlu0.b32.cont [12/16] 0.0, 128
          %598 = vxpose.xlu0.b32.cont [13/16] 0.0, 128
          %599 = vxpose.xlu0.b32.cont [14/16] 0.0, 128
          %600 = vxpose.xlu0.b32.cont [15/16] 0.0, 128
          %601 = vxpose.xlu0.b32.end [16/16] 0.0, 128
          %v602 = vpop.trf.xlu0
          %v603 = vpop.trf.xlu0
          %v604 = vpop.trf.xlu0
          %v605 = vpop.trf.xlu0
          %v606 = vpop.trf.xlu0
          %v607 = vpop.trf.xlu0
          %v608 = vpop.trf.xlu0
          %v609 = vpop.trf.xlu0
          %v610 = vpop.trf.xlu0
          %v611 = vpop.trf.xlu0
          %v612 = vpop.trf.xlu0
          %v613 = vpop.trf.xlu0
          %v614 = vpop.trf.xlu0
          %v615 = vpop.trf.xlu0
          %v616 = vpop.trf.xlu0
          %v617 = vpop.trf.xlu0
          %vm618 = vcmask 64512
          %619 = vst.msk [vmem:[#allocation2] sm:$0xff] %vm618, %v602
          %620 = vst.msk [vmem:[#allocation2 + $0x8] sm:$0xff] %vm618, %v603
          %621 = vst.msk [vmem:[#allocation2 + $0x10] sm:$0xff] %vm618, %v604
          %622 = vst.msk [vmem:[#allocation2 + $0x18] sm:$0xff] %vm618, %v605
          %623 = vst.msk [vmem:[#allocation2 + $0x20] sm:$0xff] %vm618, %v606
          %624 = vst.msk [vmem:[#allocation2 + $0x28] sm:$0xff] %vm618, %v607
          %625 = vst.msk [vmem:[#allocation2 + $0x30] sm:$0xff] %vm618, %v608
          %626 = vst.msk [vmem:[#allocation2 + $0x38] sm:$0xff] %vm618, %v609
          %627 = vst.msk [vmem:[#allocation2 + $0x40] sm:$0xff] %vm618, %v610
          %628 = vst.msk [vmem:[#allocation2 + $0x48] sm:$0xff] %vm618, %v611
          %629 = vst.msk [vmem:[#allocation2 + $0x50] sm:$0xff] %vm618, %v612
          %630 = vst.msk [vmem:[#allocation2 + $0x58] sm:$0xff] %vm618, %v613
          %631 = vst.msk [vmem:[#allocation2 + $0x60] sm:$0xff] %vm618, %v614
          %632 = vst.msk [vmem:[#allocation2 + $0x68] sm:$0xff] %vm618, %v615
          %633 = vst.msk [vmem:[#allocation2 + $0x70] sm:$0xff] %vm618, %v616
          %634 = vst.msk [vmem:[#allocation2 + $0x78] sm:$0xff] %vm618, %v617
          %635 = vst [vmem:[#allocation3] sm:$0xff] %v583
        $region72: #{tpu_custom_call.1} parent=47 // pred_fallthru
          _
        %v636 = vld [vmem:[%s344] sm:$0xff]
        %v637 = vld [vmem:[#allocation10] sm:$0xff]
        %v638 = vld [vmem:[#allocation10 + $0x8] sm:$0xff]
        %v639 = vld [vmem:[#allocation10 + $0x10] sm:$0xff]
        %v640 = vld [vmem:[#allocation10 + $0x18] sm:$0xff]
        %v641 = vld [vmem:[%s4] sm:$0x1]
        %v643 = vlaneseq
        %v644 = vshrl.u32 %v643, 7
        %v645 = vsub.s32 0, %v644
        %v646 = vrot.slane %v641, %v645
        %vm648 = vcmask 261120
        %v650 = vsel %vm648, %v636, 0
        %652 = vmatprep.subr.mxu0 0.0
        %653 = vmatpush1.msra.mxu0 %v637
        %654 = vmatprep.subr.mxu0 0.0
        %655 = vmatpush1.msra.mxu0 %v638
        %656 = vmatprep.subr.mxu0 0.0
        %657 = vmatpush1.msra.mxu0 %v639
        %658 = vmatprep.subr.mxu0 0.0
        %659 = vmatpush1.msra.mxu0 %v640
        %660 = vmatprep.subr.mxu0 0.0
        %661 = vmatpush1.msra.mxu0 0.0
        %662 = vmatprep.subr.mxu0 0.0
        %663 = vmatpush1.msra.mxu0 0.0
        %664 = vmatprep.subr.mxu0 0.0
        %665 = vmatpush1.msra.mxu0 0.0
        %666 = vmatprep.subr.mxu0 0.0
        %667 = vmatpush1.msra.mxu0 0.0
        %668 = vmatprep.subr.mxu0 0.0
        %669 = vmatpush1.msra.mxu0 0.0
        %670 = vmatprep.subr.mxu0 0.0
        %671 = vmatpush1.msra.mxu0 0.0
        %672 = vmatprep.subr.mxu0 0.0
        %673 = vmatpush1.msra.mxu0 0.0
        %674 = vmatprep.subr.mxu0 0.0
        %675 = vmatpush1.msra.mxu0 0.0
        %676 = vmatprep.subr.mxu0 0.0
        %677 = vmatpush1.msra.mxu0 0.0
        %678 = vmatprep.subr.mxu0 0.0
        %679 = vmatpush1.msra.mxu0 0.0
        %680 = vmatprep.subr.mxu0 0.0
        %681 = vmatpush1.msra.mxu0 0.0
        %682 = vmatprep.subr.mxu0 0.0
        %683 = vmatpush1.msra.mxu0 0.0
        %684 = vmatprep.subr.mxu0 0.0
        %685 = vmatpush1.msra.mxu0 0.0
        %686 = vmatprep.subr.mxu0 0.0
        %687 = vmatpush1.msra.mxu0 0.0
        %688 = vmatprep.subr.mxu0 0.0
        %689 = vmatpush1.msra.mxu0 0.0
        %690 = vmatprep.subr.mxu0 0.0
        %691 = vmatpush1.msra.mxu0 0.0
        %692 = vmatprep.subr.mxu0 0.0
        %693 = vmatpush1.msra.mxu0 0.0
        %694 = vmatprep.subr.mxu0 0.0
        %695 = vmatpush1.msra.mxu0 0.0
        %696 = vmatprep.subr.mxu0 0.0
        %697 = vmatpush1.msra.mxu0 0.0
        %698 = vmatprep.subr.mxu0 0.0
        %699 = vmatpush1.msra.mxu0 0.0
        %700 = vmatprep.subr.mxu0 0.0
        %701 = vmatpush1.msra.mxu0 0.0
        %702 = vmatprep.subr.mxu0 0.0
        %703 = vmatpush1.msra.mxu0 0.0
        %704 = vmatprep.subr.mxu0 0.0
        %705 = vmatpush1.msra.mxu0 0.0
        %706 = vmatprep.subr.mxu0 0.0
        %707 = vmatpush1.msra.mxu0 0.0
        %708 = vmatprep.subr.mxu0 0.0
        %709 = vmatpush1.msra.mxu0 0.0
        %710 = vmatprep.subr.mxu0 0.0
        %711 = vmatpush1.msra.mxu0 0.0
        %712 = vmatprep.subr.mxu0 0.0
        %713 = vmatpush1.msra.mxu0 0.0
        %714 = vmatprep.subr.mxu0 0.0
        %715 = vmatpush1.msra.mxu0 0.0
        %716 = vmatprep.mubr.f32.mxu0 0.0
        %717 = vmatmul.mubr.f32.gmra.mrb[0].mxu0 %v650
        %v718 = vpop.f32.mrb[0].mxu0
        %v719 = vadd.f32 %v646, %v718
        %v720 = vpop.f32.mrb[0].mxu0
        %721 = vdwg.mxu0
        %v722 = vld [vmem:[#allocation2] sm:$0xff]
        %v723 = vld [vmem:[#allocation2 + $0x8] sm:$0xff]
        %v724 = vld [vmem:[#allocation2 + $0x10] sm:$0xff]
        %v725 = vld [vmem:[#allocation2 + $0x18] sm:$0xff]
        %v726 = vld [vmem:[#allocation2 + $0x20] sm:$0xff]
        %v727 = vld [vmem:[#allocation2 + $0x28] sm:$0xff]
        %v728 = vld [vmem:[#allocation2 + $0x30] sm:$0xff]
        %v729 = vld [vmem:[#allocation2 + $0x38] sm:$0xff]
        %v730 = vld [vmem:[#allocation2 + $0x40] sm:$0xff]
        %v731 = vld [vmem:[#allocation2 + $0x48] sm:$0xff]
        %v732 = vld [vmem:[#allocation2 + $0x50] sm:$0xff]
        %v733 = vld [vmem:[#allocation2 + $0x58] sm:$0xff]
        %v734 = vld [vmem:[#allocation2 + $0x60] sm:$0xff]
        %v735 = vld [vmem:[#allocation2 + $0x68] sm:$0xff]
        %v736 = vld [vmem:[#allocation2 + $0x70] sm:$0xff]
        %v737 = vld [vmem:[#allocation2 + $0x78] sm:$0xff]
        %738 = vmatprep.subr.mxu0 0.0
        %739 = vmatpush1.msra.mxu0 %v722
        %740 = vmatprep.subr.mxu0 0.0
        %741 = vmatpush1.msra.mxu0 %v723
        %742 = vmatprep.subr.mxu0 0.0
        %743 = vmatpush1.msra.mxu0 %v724
        %744 = vmatprep.subr.mxu0 0.0
        %745 = vmatpush1.msra.mxu0 %v725
        %746 = vmatprep.subr.mxu0 0.0
        %747 = vmatpush1.msra.mxu0 %v726
        %748 = vmatprep.subr.mxu0 0.0
        %749 = vmatpush1.msra.mxu0 %v727
        %750 = vmatprep.subr.mxu0 0.0
        %751 = vmatpush1.msra.mxu0 %v728
        %752 = vmatprep.subr.mxu0 0.0
        %753 = vmatpush1.msra.mxu0 %v729
        %754 = vmatprep.subr.mxu0 0.0
        %755 = vmatpush1.msra.mxu0 %v730
        %756 = vmatprep.subr.mxu0 0.0
        %757 = vmatpush1.msra.mxu0 %v731
        %758 = vmatprep.subr.mxu0 0.0
        %759 = vmatpush1.msra.mxu0 %v732
        %760 = vmatprep.subr.mxu0 0.0
        %761 = vmatpush1.msra.mxu0 %v733
        %762 = vmatprep.subr.mxu0 0.0
        %763 = vmatpush1.msra.mxu0 %v734
        %764 = vmatprep.subr.mxu0 0.0
        %765 = vmatpush1.msra.mxu0 %v735
        %766 = vmatprep.subr.mxu0 0.0
        %767 = vmatpush1.msra.mxu0 %v736
        %768 = vmatprep.subr.mxu0 0.0
        %769 = vmatpush1.msra.mxu0 %v737
        %770 = vmatprep.subr.mxu0 0.0
        %771 = vmatpush1.msra.mxu0 0.0
        %772 = vmatprep.subr.mxu0 0.0
        %773 = vmatpush1.msra.mxu0 0.0
        %774 = vmatprep.subr.mxu0 0.0
        %775 = vmatpush1.msra.mxu0 0.0
        %776 = vmatprep.subr.mxu0 0.0
        %777 = vmatpush1.msra.mxu0 0.0
        %778 = vmatprep.subr.mxu0 0.0
        %779 = vmatpush1.msra.mxu0 0.0
        %780 = vmatprep.subr.mxu0 0.0
        %781 = vmatpush1.msra.mxu0 0.0
        %782 = vmatprep.subr.mxu0 0.0
        %783 = vmatpush1.msra.mxu0 0.0
        %784 = vmatprep.subr.mxu0 0.0
        %785 = vmatpush1.msra.mxu0 0.0
        %786 = vmatprep.subr.mxu0 0.0
        %787 = vmatpush1.msra.mxu0 0.0
        %788 = vmatprep.subr.mxu0 0.0
        %789 = vmatpush1.msra.mxu0 0.0
        %790 = vmatprep.subr.mxu0 0.0
        %791 = vmatpush1.msra.mxu0 0.0
        %792 = vmatprep.subr.mxu0 0.0
        %793 = vmatpush1.msra.mxu0 0.0
        %794 = vmatprep.subr.mxu0 0.0
        %795 = vmatpush1.msra.mxu0 0.0
        %796 = vmatprep.subr.mxu0 0.0
        %797 = vmatpush1.msra.mxu0 0.0
        %798 = vmatprep.subr.mxu0 0.0
        %799 = vmatpush1.msra.mxu0 0.0
        %800 = vmatprep.subr.mxu0 0.0
        %801 = vmatpush1.msra.mxu0 0.0
        %802 = vmatprep.mubr.f32.mxu0 0.0
        %803 = vmatmul.mubr.f32.gmra.mrb[0].mxu0 %v719
        %v804 = vpop.f32.mrb[0].mxu0
        %v805 = vadd.f32 0.0, %v804
        %v806 = vpop.f32.mrb[0].mxu0
        %807 = vdwg.mxu0
        %vm808 = vcmask 64512
        %v809 = vsel %vm808, %v805, -inf
        %810 = vmax.xlane.f32.xlu0 %v809
        %v811 = vpop.xlane.xlu0 %810
        %v812 = vsub.f32 %v805, %v811
        %v813 = vmul.f32 %v812, 1.442695
        %v814 = vpow.pop %v813
        %v815 = vsel %vm808, %v814, 0.0
        %816 = vadd.xlane.f32.xlu0 %v815
        %v817 = vpop.xlane.xlu0 %816
        %v818 = vld [vmem:[#allocation3] sm:$0xff]
        %v820 = vsel %vm808, %v814, 0
        %822 = vmatprep.subr.mxu0 0.0
        %823 = vmatpush1.msra.mxu0 %v818
        %824 = vmatprep.subr.mxu0 0.0
        %825 = vmatpush1.msra.mxu0 0.0
        %826 = vmatprep.subr.mxu0 0.0
        %827 = vmatpush1.msra.mxu0 0.0
        %828 = vmatprep.subr.mxu0 0.0
        %829 = vmatpush1.msra.mxu0 0.0
        %830 = vmatprep.subr.mxu0 0.0
        %831 = vmatpush1.msra.mxu0 0.0
        %832 = vmatprep.subr.mxu0 0.0
        %833 = vmatpush1.msra.mxu0 0.0
        %834 = vmatprep.subr.mxu0 0.0
        %835 = vmatpush1.msra.mxu0 0.0
        %836 = vmatprep.subr.mxu0 0.0
        %837 = vmatpush1.msra.mxu0 0.0
        %838 = vmatprep.subr.mxu0 0.0
        %839 = vmatpush1.msra.mxu0 0.0
        %840 = vmatprep.subr.mxu0 0.0
        %841 = vmatpush1.msra.mxu0 0.0
        %842 = vmatprep.subr.mxu0 0.0
        %843 = vmatpush1.msra.mxu0 0.0
        %844 = vmatprep.subr.mxu0 0.0
        %845 = vmatpush1.msra.mxu0 0.0
        %846 = vmatprep.subr.mxu0 0.0
        %847 = vmatpush1.msra.mxu0 0.0
        %848 = vmatprep.subr.mxu0 0.0
        %849 = vmatpush1.msra.mxu0 0.0
        %850 = vmatprep.subr.mxu0 0.0
        %851 = vmatpush1.msra.mxu0 0.0
        %852 = vmatprep.subr.mxu0 0.0
        %853 = vmatpush1.msra.mxu0 0.0
        %854 = vmatprep.subr.mxu0 0.0
        %855 = vmatpush1.msra.mxu0 0.0
        %856 = vmatprep.subr.mxu0 0.0
        %857 = vmatpush1.msra.mxu0 0.0
        %858 = vmatprep.subr.mxu0 0.0
        %859 = vmatpush1.msra.mxu0 0.0
        %860 = vmatprep.subr.mxu0 0.0
        %861 = vmatpush1.msra.mxu0 0.0
        %862 = vmatprep.subr.mxu0 0.0
        %863 = vmatpush1.msra.mxu0 0.0
        %864 = vmatprep.subr.mxu0 0.0
        %865 = vmatpush1.msra.mxu0 0.0
        %866 = vmatprep.subr.mxu0 0.0
        %867 = vmatpush1.msra.mxu0 0.0
        %868 = vmatprep.subr.mxu0 0.0
        %869 = vmatpush1.msra.mxu0 0.0
        %870 = vmatprep.subr.mxu0 0.0
        %871 = vmatpush1.msra.mxu0 0.0
        %872 = vmatprep.subr.mxu0 0.0
        %873 = vmatpush1.msra.mxu0 0.0
        %874 = vmatprep.subr.mxu0 0.0
        %875 = vmatpush1.msra.mxu0 0.0
        %876 = vmatprep.subr.mxu0 0.0
        %877 = vmatpush1.msra.mxu0 0.0
        %878 = vmatprep.subr.mxu0 0.0
        %879 = vmatpush1.msra.mxu0 0.0
        %880 = vmatprep.subr.mxu0 0.0
        %881 = vmatpush1.msra.mxu0 0.0
        %882 = vmatprep.subr.mxu0 0.0
        %883 = vmatpush1.msra.mxu0 0.0
        %884 = vmatprep.subr.mxu0 0.0
        %885 = vmatpush1.msra.mxu0 0.0
        %886 = vmatprep.mubr.f32.mxu0 0.0
        %887 = vmatmul.mubr.f32.gmra.mrb[0].mxu0 %v820
        %v888 = vpop.f32.mrb[0].mxu0
        %v889 = vadd.f32 0.0, %v888
        %v890 = vpop.f32.mrb[0].mxu0
        %891 = vdwg.mxu0
        %v892 = vrcp.pop %v817
        %v893 = vmul.f32 %v889, %v892
        %894 = vst [vmem:[%s410] sm:$0xff] %v893
        %s895 = sand.u32 %s214, 1
        %s896 = scalar_lea.sflag [#allocation6], %s895
        %s897 = sand.u32 %s214, 1
        %s898 = smul.addr %s897, 8
        %s899 = scalar_lea.vmem [#allocation13], %s898
        // Predicated region
        $region73: #{tpu_custom_call.1} parent=47 // pred_check
          %p900 = pneg %p224
        $region74: #{tpu_custom_call.1} parent=47 // pred_check_branch
          %902 = sbr.rel (%p900) target = $region76
        $region75: #{tpu_custom_call.1} parent=47 // pred_region
          %s904 = ssub.s32 128, 128
          %905 = vsyncadd %s896, %s904
          %s906 = sadd.s32 %s33, %s32
          %s907 = smul.addr %s906, 128
          %s908 = scalar_lea.hbm %s7, %s907
          %s910 = sshll.u32 %s899, 4
          %s911 = int_to_ptr.vmem [resolvable:$true] %s910
          %913 = dma.vmem_to_hbm [thread:$0]  %s911, 128, %s908, %s896
        $region76: #{tpu_custom_call.1} parent=47 // pred_fallthru
          _
      $region48: #{tpu_custom_call.1} parent=5 // pred_fallthru
        _
      %p914 = scmp.le.s32.totalorder 2, %s23
      // Predicated region
      $region77: #{tpu_custom_call.1} parent=5 // pred_check
        %p915 = pneg %p914
      $region78: #{tpu_custom_call.1} parent=5 // pred_check_branch
        %917 = sbr.rel (%p915) target = $region80
      $region79: #{tpu_custom_call.1} parent=5 // pred_region
        %s918 = ssub.s32 %s23, 2
        // Predicated region
        $region81: #{tpu_custom_call.1} parent=79 // pred_check
          %p919 = pneg %p230
        $region82: #{tpu_custom_call.1} parent=79 // pred_check_branch
          %921 = sbr.rel (%p919) target = $region84
        $region83: #{tpu_custom_call.1} parent=79 // pred_region
          %s922 = sand.u32 %s215, 1
          %s923 = scalar_lea.sflag [#allocation6], %s922
          %s924 = sand.u32 %s215, 1
          %s925 = smul.addr %s924, 8
          %s926 = scalar_lea.vmem [#allocation13], %s925
          %927 = dma.done %s923, 128
        $region84: #{tpu_custom_call.1} parent=79 // pred_fallthru
          _
      $region80: #{tpu_custom_call.1} parent=5 // pred_fallthru
        _
    $region6: #{tpu_custom_call.1} parent=1 // loop_footer
      %s27 = sadd.s32 1, %s23
    $region7: #{tpu_custom_call.1} parent=1 // loop_footer_branch
      %22 = sbr.rel target = $region3
    $region8: #{tpu_custom_call.1} parent=1 // loop_exit
      _
    %928 = vsyncpa [#allocation5], 1
    %s929 = scalar_lea.sflag [#allocation5], 1
    %930 = vsyncpa %s929, 1
    %931 = vsyncpa [#allocation8], 1
    %s932 = scalar_lea.sflag [#allocation8], 1
    %933 = vsyncpa %s932, 1
    %934 = vsyncpa [#allocation11], 1
    %935 = vsyncpa [#allocation6], 1
    %s936 = scalar_lea.sflag [#allocation6], 1
    %937 = vsyncpa %s936, 1

</llo_original>
